<compile_context>
chip_gen: v6e
topology: v6e:2x2x1
jax: 0.10.0
libtpu: 0.0.40
codegen_flags: <defaults>
</compile_context>

<pallas_src>
import functools

import jax
import jax.numpy as jnp
from jax.experimental import pallas as pl
from jax.experimental.pallas import tpu as pltpu

INPUT_SIZE = 3
HIDDEN_SIZE = 64
OUTPUT_SIZE = 2
LANE = 128          # TPU lane width; hidden padded to this


def _round_up(n, m):
    return ((n + m - 1) // m) * m


def _cdiv(a, b):
    return (a + b - 1) // b


def _mlp_kernel(x_ref, w1_ref, b1_ref, w2_ref, b2_ref, w3t_ref, b3_ref, o_ref):
    """One (TB, in) batch tile -> (TB, out_features) logits tile."""
    x = x_ref[...]                                     # (TB, in)  f32
    in_features = x_ref.shape[1]
    n_out = w3t_ref.shape[0]

    # --- Layer 1 on the VPU: K=3 is far too narrow to earn an MXU round-trip.
    # h1 = relu(sum_f x[:, f] * w1[f, :] + b1)  as broadcast FMAs (3 iters).
    h1 = b1_ref[...]                                   # (1, LANE) broadcasts
    for f in range(in_features):                       # static unroll
        h1 = h1 + x[:, f:f + 1] * w1_ref[f:f + 1, :]
    h1 = jnp.maximum(h1, 0.0)                          # (TB, LANE)

    # --- Layer 2 on the MXU: (TB,128) @ (128,128), f32 accumulate.
    # Padded columns of w2/b2 are zero, so padded lanes of h2 stay zero.
    h2 = jnp.dot(h1, w2_ref[...], preferred_element_type=jnp.float32)
    h2 = jnp.maximum(h2 + b2_ref[...], 0.0)            # (TB, LANE)

    # --- Layer 3 on the VPU + XLU: only `n_out` (=2) real output columns, so
    # a padded MXU dot would waste half of all MXU pushes.  Instead:
    #   out[:, j] = sum_lanes(h2 * w3[:, j]) + b3[j]
    w3t = w3t_ref[...]                                 # (n_out, LANE), row j = w3[:, j]
    b3 = b3_ref[...]                                   # (1, n_out)
    for j in range(n_out):                             # static unroll (2 iters)
        col = jnp.sum(h2 * w3t[j:j + 1, :], axis=-1, keepdims=True)   # (TB, 1)
        o_ref[:, j:j + 1] = (col + b3[:, j:j + 1]).astype(o_ref.dtype)


@functools.partial(jax.jit, static_argnames=("block_batch",))
def _forward_logits(x, params, *, block_batch=2048):
    """Jitted hot path: (B, in) or (B, T, in) -> (B, out_features) logits."""
    if x.ndim == 3:
        x = x[:, -1, :]                                # last timestep (glue)
    x = x.astype(jnp.float32)
    batch, in_features = x.shape

    w1, b1, w2, b2, w3, b3 = params
    hidden = w1.shape[1]
    out_features = w3.shape[1]

    # Zero-pad hidden lane dim to 128 (lane-dense vregs, unmasked MXU tiles).
    hp = _round_up(hidden, LANE)
    w1p = jnp.zeros((in_features, hp), jnp.float32).at[:, :hidden].set(w1)
    b1p = jnp.zeros((1, hp), jnp.float32).at[0, :hidden].set(b1)
    w2p = jnp.zeros((hp, hp), jnp.float32).at[:hidden, :hidden].set(w2)
    b2p = jnp.zeros((1, hp), jnp.float32).at[0, :hidden].set(b2)
    # Layer-3 weights consumed row-wise on the VPU: store transposed (out, hp).
    w3tp = jnp.zeros((out_features, hp), jnp.float32).at[:, :hidden].set(w3.T)
    b3r = jnp.asarray(b3, jnp.float32).reshape(1, out_features)

    # Batch tiling: tb multiple of 8 sublanes, <= user cap, and <= ceil(B/2)
    # (rounded up to 8) so there are >=2 grid steps whenever the batch allows
    # -> the "parallel" axis actually shards across both v7x TensorCores.
    tb_cap = _round_up(max(min(block_batch, batch), 1), 8)
    tb_two = _round_up(max(_cdiv(batch, 2), 8), 8)
    tb = max(8, min(tb_cap, tb_two))
    b_pad = _round_up(batch, tb)
    if b_pad != batch:
        x = jnp.pad(x, ((0, b_pad - batch), (0, 0)))

    grid = (b_pad // tb,)
    logits_pad = pl.pallas_call(
        _mlp_kernel,
        out_shape=jax.ShapeDtypeStruct((b_pad, out_features), jnp.float32),
        grid=grid,
        in_specs=[
            pl.BlockSpec((tb, in_features), lambda i: (i, 0)),        # x tile
            pl.BlockSpec((in_features, hp), lambda i: (0, 0)),        # w1 (resident)
            pl.BlockSpec((1, hp), lambda i: (0, 0)),                  # b1
            pl.BlockSpec((hp, hp), lambda i: (0, 0)),                 # w2
            pl.BlockSpec((1, hp), lambda i: (0, 0)),                  # b2
            pl.BlockSpec((out_features, hp), lambda i: (0, 0)),       # w3^T
            pl.BlockSpec((1, out_features), lambda i: (0, 0)),        # b3
        ],
        # Last block dim == full array dim (2): legal, and HBM side of the
        # writeback is contiguous (8 B/row instead of the old 512 B/row).
        out_specs=pl.BlockSpec((tb, out_features), lambda i: (i, 0)),
        compiler_params=pltpu.CompilerParams(
            dimension_semantics=("parallel",),        # v7x: shard over 2 TCs
            vmem_limit_bytes=32 * 1024 * 1024),       # headroom for tb sweeps
    )(x, w1p, b1p, w2p, b2p, w3tp, b3r)

    return logits_pad[:batch]


def feedforward_baseline(x, params, *, block_batch=2048):
    """Forward pass of FeedforwardBaseline.

    x: (B, input_size) or (B, T, input_size) float32
    returns (logits (B, OUTPUT_SIZE), hidden (1, B, 64))
    """
    logits = _forward_logits(x, params, block_batch=block_batch)
    batch = x.shape[0]
    # torch.zeros(1, x.size(0), 64) is pure glue; allocate it OUTSIDE the
    # jitted hot path so its zero-fill doesn't ride along with the kernel.
    hidden_state = jnp.zeros((1, batch, 64), dtype=jnp.float32)
    return logits, hidden_state


def init_params(key):
    """Deterministic init mimicking nn.Linear (uniform ±1/sqrt(fan_in))."""
    ks = jax.random.split(key, 6)

    def linear(kw, kb, fan_in, fan_out):
        bound = 1.0 / jnp.sqrt(fan_in)
        w = jax.random.uniform(kw, (fan_in, fan_out), jnp.float32, -bound, bound)
        b = jax.random.uniform(kb, (fan_out,), jnp.float32, -bound, bound)
        return w, b

    w1, b1 = linear(ks[0], ks[1], INPUT_SIZE, HIDDEN_SIZE)
    w2, b2 = linear(ks[2], ks[3], HIDDEN_SIZE, HIDDEN_SIZE)
    w3, b3 = linear(ks[4], ks[5], HIDDEN_SIZE, OUTPUT_SIZE)
    return (w1, b1, w2, b2, w3, b3)


if __name__ == "__main__":
    key = jax.random.PRNGKey(0)
    pkey, xkey, xkey2 = jax.random.split(key, 3)
    params = init_params(pkey)

    def ref_forward(xin):
        xl = xin[:, -1, :] if xin.ndim == 3 else xin
        w1, b1, w2, b2, w3, b3 = params
        h = jnp.maximum(xl @ w1 + b1, 0.0)
        h = jnp.maximum(h @ w2 + b2, 0.0)
        return h @ w3 + b3

    # 1) Sequence-shaped input (B, T, F) = (2, 8, 3); forward uses last step.
    x_seq = jax.random.normal(xkey, (2, 8, 3), dtype=jnp.float32)
    logits, hidden = feedforward_baseline(x_seq, params)
    jax.block_until_ready((logits, hidden))
    assert logits.shape == (2, OUTPUT_SIZE) and hidden.shape == (1, 2, 64)
    assert jnp.allclose(logits, ref_forward(x_seq), atol=1e-5, rtol=1e-5)
    assert jnp.all(hidden == 0.0)

    # 2) Larger 2-D batch exercising multiple grid tiles (grid=(3,), tb=128).
    x_big = jax.random.normal(xkey2, (300, 3), dtype=jnp.float32)
    logits_big, hidden_big = feedforward_baseline(x_big, params, block_batch=128)
    jax.block_until_ready((logits_big, hidden_big))
    assert logits_big.shape == (300, OUTPUT_SIZE)
    assert hidden_big.shape == (1, 300, 64)
    assert jnp.allclose(logits_big, ref_forward(x_big), atol=1e-5, rtol=1e-5)

    # 3) Default block_batch path with batch>8: tb capped at ceil(B/2) -> 2 tiles.
    logits_def, _ = feedforward_baseline(x_big, params)
    jax.block_until_ready(logits_def)
    assert jnp.allclose(logits_def, ref_forward(x_big), atol=1e-5, rtol=1e-5)

    print("KERNEL_OK")
</pallas_src>

<mosaic_0001>
module attributes {stable_mosaic.version = 11 : i64} {
  func.func @_mlp_kernel(%arg0: i32, %arg1: memref<8x3xf32, #tpu.memory_space<vmem>>, %arg2: memref<3x128xf32, #tpu.memory_space<vmem>>, %arg3: memref<1x128xf32, #tpu.memory_space<vmem>>, %arg4: memref<128x128xf32, #tpu.memory_space<vmem>>, %arg5: memref<1x128xf32, #tpu.memory_space<vmem>>, %arg6: memref<2x128xf32, #tpu.memory_space<vmem>>, %arg7: memref<1x2xf32, #tpu.memory_space<vmem>>, %arg8: memref<8x2xf32, #tpu.memory_space<vmem>>) attributes {dimension_semantics = [#tpu.dimension_semantics<parallel>], iteration_bounds = array<i64: 1>, scalar_prefetch = 0 : i64, scratch_operands = 0 : i64, tpu.core_type = #tpu.core_type<tc>, window_params = [{transform_indices = @transform_0, window_bounds = array<i64: 8, 3>}, {pipeline_mode = #tpu.pipeline_mode<synchronous>, transform_indices = @transform_1, window_bounds = array<i64: 3, 128>}, {pipeline_mode = #tpu.pipeline_mode<synchronous>, transform_indices = @transform_2, window_bounds = array<i64: 1, 128>}, {pipeline_mode = #tpu.pipeline_mode<synchronous>, transform_indices = @transform_3, window_bounds = array<i64: 128, 128>}, {pipeline_mode = #tpu.pipeline_mode<synchronous>, transform_indices = @transform_4, window_bounds = array<i64: 1, 128>}, {pipeline_mode = #tpu.pipeline_mode<synchronous>, transform_indices = @transform_5, window_bounds = array<i64: 2, 128>}, {pipeline_mode = #tpu.pipeline_mode<synchronous>, transform_indices = @transform_6, window_bounds = array<i64: 1, 2>}, {transform_indices = @transform_7, window_bounds = array<i64: 8, 2>}]} {
    %c0 = arith.constant 0 : index
    %c0_0 = arith.constant 0 : index
    %0 = vector.load %arg1[%c0, %c0_0] : memref<8x3xf32, #tpu.memory_space<vmem>>, vector<8x3xf32>
    %c0_1 = arith.constant 0 : index
    %c0_2 = arith.constant 0 : index
    %1 = vector.load %arg3[%c0_1, %c0_2] : memref<1x128xf32, #tpu.memory_space<vmem>>, vector<1x128xf32>
    %2 = vector.extract_strided_slice %0 {offsets = [0, 0], sizes = [8, 1], strides = [1, 1]} : vector<8x3xf32> to vector<8x1xf32>
    %c0_3 = arith.constant 0 : index
    %c0_4 = arith.constant 0 : index
    %3 = vector.load %arg2[%c0_3, %c0_4] : memref<3x128xf32, #tpu.memory_space<vmem>>, vector<1x128xf32>
    %4 = vector.broadcast %2 : vector<8x1xf32> to vector<8x128xf32>
    %5 = vector.broadcast %3 : vector<1x128xf32> to vector<8x128xf32>
    %6 = arith.mulf %4, %5 : vector<8x128xf32>
    %7 = vector.broadcast %1 : vector<1x128xf32> to vector<8x128xf32>
    %8 = arith.addf %7, %6 : vector<8x128xf32>
    %9 = vector.extract_strided_slice %0 {offsets = [0, 1], sizes = [8, 1], strides = [1, 1]} : vector<8x3xf32> to vector<8x1xf32>
    %c1 = arith.constant 1 : index
    %c0_5 = arith.constant 0 : index
    %10 = vector.load %arg2[%c1, %c0_5] : memref<3x128xf32, #tpu.memory_space<vmem>>, vector<1x128xf32>
    %11 = vector.broadcast %9 : vector<8x1xf32> to vector<8x128xf32>
    %12 = vector.broadcast %10 : vector<1x128xf32> to vector<8x128xf32>
    %13 = arith.mulf %11, %12 : vector<8x128xf32>
    %14 = arith.addf %8, %13 : vector<8x128xf32>
    %15 = vector.extract_strided_slice %0 {offsets = [0, 2], sizes = [8, 1], strides = [1, 1]} : vector<8x3xf32> to vector<8x1xf32>
    %c2 = arith.constant 2 : index
    %c0_6 = arith.constant 0 : index
    %16 = vector.load %arg2[%c2, %c0_6] : memref<3x128xf32, #tpu.memory_space<vmem>>, vector<1x128xf32>
    %17 = vector.broadcast %15 : vector<8x1xf32> to vector<8x128xf32>
    %18 = vector.broadcast %16 : vector<1x128xf32> to vector<8x128xf32>
    %19 = arith.mulf %17, %18 : vector<8x128xf32>
    %20 = arith.addf %14, %19 : vector<8x128xf32>
    %cst = arith.constant 0.000000e+00 : f32
    %21 = vector.broadcast %cst : f32 to vector<8x128xf32>
    %22 = arith.maximumf %20, %21 : vector<8x128xf32>
    %c0_7 = arith.constant 0 : index
    %c0_8 = arith.constant 0 : index
    %23 = vector.load %arg4[%c0_7, %c0_8] : memref<128x128xf32, #tpu.memory_space<vmem>>, vector<128x128xf32>
    %cst_9 = arith.constant dense<0.000000e+00> : vector<8x128xf32>
    %24 = tpu.matmul %22, %23, %cst_9 {dimension_numbers = #tpu.dot_dimension_numbers<[1], [0], [0], [1], [0, 0, 1, 1], [], []>} : vector<8x128xf32>, vector<128x128xf32>, vector<8x128xf32> -> vector<8x128xf32>
    %c0_10 = arith.constant 0 : index
    %c0_11 = arith.constant 0 : index
    %25 = vector.load %arg5[%c0_10, %c0_11] : memref<1x128xf32, #tpu.memory_space<vmem>>, vector<1x128xf32>
    %26 = vector.broadcast %25 : vector<1x128xf32> to vector<8x128xf32>
    %27 = arith.addf %24, %26 : vector<8x128xf32>
    %cst_12 = arith.constant 0.000000e+00 : f32
    %28 = vector.broadcast %cst_12 : f32 to vector<8x128xf32>
    %29 = arith.maximumf %27, %28 : vector<8x128xf32>
    %c0_13 = arith.constant 0 : index
    %c0_14 = arith.constant 0 : index
    %30 = vector.load %arg6[%c0_13, %c0_14] : memref<2x128xf32, #tpu.memory_space<vmem>>, vector<2x128xf32>
    %c0_15 = arith.constant 0 : index
    %c0_16 = arith.constant 0 : index
    %31 = vector.load %arg7[%c0_15, %c0_16] : memref<1x2xf32, #tpu.memory_space<vmem>>, vector<1x2xf32>
    %32 = vector.extract_strided_slice %30 {offsets = [0, 0], sizes = [1, 128], strides = [1, 1]} : vector<2x128xf32> to vector<1x128xf32>
    %33 = vector.broadcast %32 : vector<1x128xf32> to vector<8x128xf32>
    %34 = arith.mulf %29, %33 : vector<8x128xf32>
    %cst_17 = arith.constant dense<0.000000e+00> : vector<8xf32>
    %35 = vector.multi_reduction <add>, %34, %cst_17 [1] : vector<8x128xf32> to vector<8xf32>
    %36 = vector.shape_cast %35 : vector<8xf32> to vector<8x1xf32>
    %37 = vector.extract_strided_slice %31 {offsets = [0, 0], sizes = [1, 1], strides = [1, 1]} : vector<1x2xf32> to vector<1x1xf32>
    %38 = vector.broadcast %37 : vector<1x1xf32> to vector<8x1xf32>
    %39 = arith.addf %36, %38 : vector<8x1xf32>
    %c0_18 = arith.constant 0 : index
    %c0_19 = arith.constant 0 : index
    %40 = vector.load %arg8[%c0_18, %c0_19] : memref<8x2xf32, #tpu.memory_space<vmem>>, vector<8x1xf32>
    tpu.vector_store %arg8[%c0_18, %c0_19], %39 {strides = array<i32>} : memref<8x2xf32, #tpu.memory_space<vmem>>, vector<8x1xf32>,
    %41 = vector.extract_strided_slice %30 {offsets = [1, 0], sizes = [1, 128], strides = [1, 1]} : vector<2x128xf32> to vector<1x128xf32>
    %42 = vector.broadcast %41 : vector<1x128xf32> to vector<8x128xf32>
    %43 = arith.mulf %29, %42 : vector<8x128xf32>
    %cst_20 = arith.constant dense<0.000000e+00> : vector<8xf32>
    %44 = vector.multi_reduction <add>, %43, %cst_20 [1] : vector<8x128xf32> to vector<8xf32>
    %45 = vector.shape_cast %44 : vector<8xf32> to vector<8x1xf32>
    %46 = vector.extract_strided_slice %31 {offsets = [0, 1], sizes = [1, 1], strides = [1, 1]} : vector<1x2xf32> to vector<1x1xf32>
    %47 = vector.broadcast %46 : vector<1x1xf32> to vector<8x1xf32>
    %48 = arith.addf %45, %47 : vector<8x1xf32>
    %c0_21 = arith.constant 0 : index
    %c1_22 = arith.constant 1 : index
    %49 = vector.load %arg8[%c0_21, %c1_22] : memref<8x2xf32, #tpu.memory_space<vmem>>, vector<8x1xf32>
    tpu.vector_store %arg8[%c0_21, %c1_22], %48 {strides = array<i32>} : memref<8x2xf32, #tpu.memory_space<vmem>>, vector<8x1xf32>,
    return
  }
  func.func @transform_0(%arg0: i32) -> (i32, i32) {
    %c0_i32 = arith.constant 0 : i32
    %c0_i32_0 = arith.constant 0 : i32
    return %arg0, %c0_i32 : i32, i32
  }
  func.func @transform_1(%arg0: i32) -> (i32, i32) {
    %c0_i32 = arith.constant 0 : i32
    %c0_i32_0 = arith.constant 0 : i32
    %c0_i32_1 = arith.constant 0 : i32
    return %c0_i32, %c0_i32_0 : i32, i32
  }
  func.func @transform_2(%arg0: i32) -> (i32, i32) {
    %c0_i32 = arith.constant 0 : i32
    %c0_i32_0 = arith.constant 0 : i32
    %c0_i32_1 = arith.constant 0 : i32
    return %c0_i32, %c0_i32_0 : i32, i32
  }
  func.func @transform_3(%arg0: i32) -> (i32, i32) {
    %c0_i32 = arith.constant 0 : i32
    %c0_i32_0 = arith.constant 0 : i32
    %c0_i32_1 = arith.constant 0 : i32
    return %c0_i32, %c0_i32_0 : i32, i32
  }
  func.func @transform_4(%arg0: i32) -> (i32, i32) {
    %c0_i32 = arith.constant 0 : i32
    %c0_i32_0 = arith.constant 0 : i32
    %c0_i32_1 = arith.constant 0 : i32
    return %c0_i32, %c0_i32_0 : i32, i32
  }
  func.func @transform_5(%arg0: i32) -> (i32, i32) {
    %c0_i32 = arith.constant 0 : i32
    %c0_i32_0 = arith.constant 0 : i32
    %c0_i32_1 = arith.constant 0 : i32
    return %c0_i32, %c0_i32_0 : i32, i32
  }
  func.func @transform_6(%arg0: i32) -> (i32, i32) {
    %c0_i32 = arith.constant 0 : i32
    %c0_i32_0 = arith.constant 0 : i32
    %c0_i32_1 = arith.constant 0 : i32
    return %c0_i32, %c0_i32_0 : i32, i32
  }
  func.func @transform_7(%arg0: i32) -> (i32, i32) {
    %c0_i32 = arith.constant 0 : i32
    %c0_i32_0 = arith.constant 0 : i32
    return %arg0, %c0_i32 : i32, i32
  }
}

</mosaic_0001>

<llo_original>
// kernel: _forward_logits.1
$region0: #{_forward_logits.1}
  #allocation0 [shape = 'u32[]', space=smem, size = 0x4, offset = 0x4, fixed_abs, tag = 'smem constant byte address 0x4 - core index']
  #allocation1 [shape = 'u32[144,128]{1,0:T(1,128)}', space=vmem, size = 0x12000, scoped, tag = 'internal scratch']
  %s0 = inlined_call_operand.vmem [shape: f32[8,3], index: 0, kind: input, shape index: {}]
  %s1 = inlined_call_operand.vmem [shape: f32[3,128], index: 1, kind: input, shape index: {}]
  %s2 = inlined_call_operand.vmem [shape: f32[1,128], index: 2, kind: input, shape index: {}]
  %s3 = inlined_call_operand.vmem [shape: f32[128,128], index: 3, kind: input, shape index: {}]
  %s4 = inlined_call_operand.vmem [shape: f32[1,128], index: 4, kind: input, shape index: {}]
  %s5 = inlined_call_operand.vmem [shape: f32[2,128], index: 5, kind: input, shape index: {}]
  %s6 = inlined_call_operand.vmem [shape: f32[1,2], index: 6, kind: input, shape index: {}]
  %s7 = inlined_call_operand.vmem [shape: f32[8,2], index: 7, kind: output, shape index: {}]
  %s8 = sld [smem:[#allocation0]]
  $region38: #{_forward_logits.1} parent=0
    _
  %s10 = ssub.s32 1, %s8
  %s11 = scalar_select 0, %s10, %s8
  // Predicated region
  $region2: #{_forward_logits.1} parent=0 // pred_check
    _
  $region3: #{_forward_logits.1} parent=0 // pred_check_branch
    %13 = sbr.rel (0) target = $region5
  $region4: #{_forward_logits.1} parent=0 // pred_region
    _
  $region5: #{_forward_logits.1} parent=0 // pred_fallthru
    _
  // Predicated region
  $region6: #{_forward_logits.1} parent=0 // pred_check
    _
  $region7: #{_forward_logits.1} parent=0 // pred_check_branch
    %15 = sbr.rel (0) target = $region9
  $region8: #{_forward_logits.1} parent=0 // pred_region
    _
  $region9: #{_forward_logits.1} parent=0 // pred_fallthru
    _
  // Predicated region
  $region10: #{_forward_logits.1} parent=0 // pred_check
    _
  $region11: #{_forward_logits.1} parent=0 // pred_check_branch
    %17 = sbr.rel (0) target = $region13
  $region12: #{_forward_logits.1} parent=0 // pred_region
    _
  $region13: #{_forward_logits.1} parent=0 // pred_fallthru
    _
  // Predicated region
  $region14: #{_forward_logits.1} parent=0 // pred_check
    _
  $region15: #{_forward_logits.1} parent=0 // pred_check_branch
    %19 = sbr.rel (0) target = $region17
  $region16: #{_forward_logits.1} parent=0 // pred_region
    _
  $region17: #{_forward_logits.1} parent=0 // pred_fallthru
    _
  // Predicated region
  $region18: #{_forward_logits.1} parent=0 // pred_check
    _
  $region19: #{_forward_logits.1} parent=0 // pred_check_branch
    %21 = sbr.rel (0) target = $region21
  $region20: #{_forward_logits.1} parent=0 // pred_region
    _
  $region21: #{_forward_logits.1} parent=0 // pred_fallthru
    _
  // Predicated region
  $region22: #{_forward_logits.1} parent=0 // pred_check
    _
  $region23: #{_forward_logits.1} parent=0 // pred_check_branch
    %23 = sbr.rel (0) target = $region25
  $region24: #{_forward_logits.1} parent=0 // pred_region
    _
  $region25: #{_forward_logits.1} parent=0 // pred_fallthru
    _
  // Predicated region
  $region26: #{_forward_logits.1} parent=0 // pred_check
    _
  $region27: #{_forward_logits.1} parent=0 // pred_check_branch
    %25 = sbr.rel (0) target = $region29
  $region28: #{_forward_logits.1} parent=0 // pred_region
    _
  $region29: #{_forward_logits.1} parent=0 // pred_fallthru
    _
  %v26 = vld [vmem:[%s0] sm:$0xff]
  %v27 = vld [vmem:[%s2] sm:$0x1]
  %v28 = vld [vmem:[%s1] sm:$0x1]
  %30 = vset.pattern.permute.xlu0 0
  %31 = vperm.xlu0 %30, %v26
  %v32 = vpop.permute.xlu0 %31
  %v34 = vlaneseq
  %v35 = vshrl.u32 %v34, 7
  %v36 = vsub.s32 0, %v35
  %v37 = vrot.slane %v28, %v36
  %v38 = vmul.f32 %v32, %v37
  %v40 = vlaneseq
  %v41 = vshrl.u32 %v40, 7
  %v42 = vsub.s32 0, %v41
  %v43 = vrot.slane %v27, %v42
  %v45 = vadd.f32 %v43, %v38
  %v46 = vld [vmem:[%s1 + $0x1] sm:$0x1]
  %47 = vset.pattern.permute.xlu0 1
  %48 = vperm.xlu0 %47, %v26
  %v49 = vpop.permute.xlu0 %48
  %v51 = vlaneseq
  %v52 = vshrl.u32 %v51, 7
  %v53 = vsub.s32 0, %v52
  %v54 = vrot.slane %v46, %v53
  %v55 = vmul.f32 %v49, %v54
  %v56 = vadd.f32 %v45, %v55
  %v57 = vld [vmem:[%s1 + $0x2] sm:$0x1]
  %58 = vset.pattern.permute.xlu0 2
  %59 = vperm.xlu0 %58, %v26
  %v60 = vpop.permute.xlu0 %59
  %v62 = vlaneseq
  %v63 = vshrl.u32 %v62, 7
  %v64 = vsub.s32 0, %v63
  %v65 = vrot.slane %v57, %v64
  %v66 = vmul.f32 %v60, %v65
  %v67 = vadd.f32 %v56, %v66
  %v68 = vmax.f32 %v67, 0.0
  %v69 = vld [vmem:[%s3] sm:$0xff]
  %v70 = vld [vmem:[%s3 + $0x8] sm:$0xff]
  %v71 = vld [vmem:[%s3 + $0x10] sm:$0xff]
  %v72 = vld [vmem:[%s3 + $0x18] sm:$0xff]
  %v73 = vld [vmem:[%s3 + $0x20] sm:$0xff]
  %v74 = vld [vmem:[%s3 + $0x28] sm:$0xff]
  %v75 = vld [vmem:[%s3 + $0x30] sm:$0xff]
  %v76 = vld [vmem:[%s3 + $0x38] sm:$0xff]
  %v77 = vld [vmem:[%s3 + $0x40] sm:$0xff]
  %v78 = vld [vmem:[%s3 + $0x48] sm:$0xff]
  %v79 = vld [vmem:[%s3 + $0x50] sm:$0xff]
  %v80 = vld [vmem:[%s3 + $0x58] sm:$0xff]
  %v81 = vld [vmem:[%s3 + $0x60] sm:$0xff]
  %v82 = vld [vmem:[%s3 + $0x68] sm:$0xff]
  %v83 = vld [vmem:[%s3 + $0x70] sm:$0xff]
  %v84 = vld [vmem:[%s3 + $0x78] sm:$0xff]
  %v85 = vld [vmem:[%s4] sm:$0x1]
  %v87 = vlaneseq
  %v88 = vshrl.u32 %v87, 7
  %v89 = vsub.s32 0, %v88
  %v90 = vrot.slane %v85, %v89
  %92 = vmatprep.subr.mxu0 0.0
  %93 = vmatpush1.msra.mxu0 %v84
  %94 = vmatprep.subr.mxu0 0.0
  %95 = vmatpush1.msra.mxu0 %v83
  %96 = vmatprep.subr.mxu0 0.0
  %97 = vmatpush1.msra.mxu0 %v82
  %98 = vmatprep.subr.mxu0 0.0
  %99 = vmatpush1.msra.mxu0 %v81
  %100 = vmatprep.subr.mxu0 0.0
  %101 = vmatpush1.msra.mxu0 %v80
  %102 = vmatprep.subr.mxu0 0.0
  %103 = vmatpush1.msra.mxu0 %v79
  %104 = vmatprep.subr.mxu0 0.0
  %105 = vmatpush1.msra.mxu0 %v78
  %106 = vmatprep.subr.mxu0 0.0
  %107 = vmatpush1.msra.mxu0 %v77
  %108 = vmatprep.subr.mxu0 0.0
  %109 = vmatpush1.msra.mxu0 %v76
  %110 = vmatprep.subr.mxu0 0.0
  %111 = vmatpush1.msra.mxu0 %v75
  %112 = vmatprep.subr.mxu0 0.0
  %113 = vmatpush1.msra.mxu0 %v74
  %114 = vmatprep.subr.mxu0 0.0
  %115 = vmatpush1.msra.mxu0 %v73
  %116 = vmatprep.subr.mxu0 0.0
  %117 = vmatpush1.msra.mxu0 %v72
  %118 = vmatprep.subr.mxu0 0.0
  %119 = vmatpush1.msra.mxu0 %v71
  %120 = vmatprep.subr.mxu0 0.0
  %121 = vmatpush1.msra.mxu0 %v70
  %122 = vmatprep.subr.mxu0 0.0
  %123 = vmatpush1.msra.mxu0 %v69
  %124 = vmatprep.subr.mxu0 0.0
  %125 = vmatpush2.msra.mxu0 0.0
  %126 = vmatprep.subr.mxu0 0.0
  %127 = vmatpush2.msra.mxu0 0.0
  %128 = vmatprep.subr.mxu0 0.0
  %129 = vmatpush2.msra.mxu0 0.0
  %130 = vmatprep.subr.mxu0 0.0
  %131 = vmatpush2.msra.mxu0 0.0
  %132 = vmatprep.subr.mxu0 0.0
  %133 = vmatpush2.msra.mxu0 0.0
  %134 = vmatprep.subr.mxu0 0.0
  %135 = vmatpush2.msra.mxu0 0.0
  %136 = vmatprep.subr.mxu0 0.0
  %137 = vmatpush2.msra.mxu0 0.0
  %138 = vmatprep.subr.mxu0 0.0
  %139 = vmatpush2.msra.mxu0 0.0
  %140 = vmatprep.subr.mxu0 0.0
  %141 = vmatpush2.msra.mxu0 0.0
  %142 = vmatprep.subr.mxu0 0.0
  %143 = vmatpush2.msra.mxu0 0.0
  %144 = vmatprep.subr.mxu0 0.0
  %145 = vmatpush2.msra.mxu0 0.0
  %146 = vmatprep.subr.mxu0 0.0
  %147 = vmatpush2.msra.mxu0 0.0
  %148 = vmatprep.subr.mxu0 0.0
  %149 = vmatpush2.msra.mxu0 0.0
  %150 = vmatprep.subr.mxu0 0.0
  %151 = vmatpush2.msra.mxu0 0.0
  %152 = vmatprep.subr.mxu0 0.0
  %153 = vmatpush2.msra.mxu0 0.0
  %154 = vmatprep.subr.mxu0 0.0
  %155 = vmatpush2.msra.mxu0 0.0
  %156 = vmatprep.mubr.f32.mxu0 0.0
  %157 = vmatmul.mubr.f32.gmra.mxu0 %v68
  %v158 = vpop.f32.mrf.mxu0
  %v159 = vadd.f32 %v90, %v158
  %v160 = vpop.f32.mrf.mxu0
  %161 = vdwg.mxu0
  %v162 = vmax.f32 %v159, 0.0
  %v163 = vld [vmem:[%s5] sm:$0x3]
  %v164 = vld [vmem:[%s6] sm:$0x1]
  %v165 = vlaneseq
  %v166 = vshrl.u32 %v165, 7
  %v167 = vsub.s32 0, %v166
  %v168 = vrot.slane %v163, %v167
  %v169 = vmul.f32 %v162, %v168
  %170 = vadd.xlane.f32.xlu0 %v169
  %v171 = vpop.xlane.xlu0 %170
  %v173 = vlaneseq
  %v174 = vshrl.u32 %v173, 7
  %v175 = vsub.s32 0, %v174
  %v176 = vrot.slane %v164, %v175
  %v178 = vadd.f32 %v171, %v176
  %vm179 = vcmask 7168
  %180 = vst.msk [vmem:[%s7] sm:$0xff] %vm179, %v178
  %v181 = vlaneseq
  %v182 = vshrl.u32 %v181, 7
  %v183 = vsub.s32 1, %v182
  %v184 = vrot.slane %v163, %v183
  %v185 = vmul.f32 %v162, %v184
  %186 = vadd.xlane.f32.xlu0 %v185
  %v187 = vpop.xlane.xlu0 %186
  %v188 = vadd.f32 %v187, %v176
  %vm189 = vcmask 15368
  %190 = vst.msk [vmem:[%s7] sm:$0xff] %vm189, %v188
  // Predicated region
  $region30: #{_forward_logits.1} parent=0 // pred_check
    _
  $region31: #{_forward_logits.1} parent=0 // pred_check_branch
    %192 = sbr.rel (0) target = $region33
  $region32: #{_forward_logits.1} parent=0 // pred_region
    _
  $region33: #{_forward_logits.1} parent=0 // pred_fallthru
    _
  // Predicated region
  $region34: #{_forward_logits.1} parent=0 // pred_check
    _
  $region35: #{_forward_logits.1} parent=0 // pred_check_branch
    %194 = sbr.rel (0) target = $region37
  $region36: #{_forward_logits.1} parent=0 // pred_region
    _
  $region37: #{_forward_logits.1} parent=0 // pred_fallthru
    _

</llo_original>
